<compile_context>
chip_gen: v5e
topology: v5e:2x2
jax: 0.10.0
libtpu: 0.0.40
codegen_flags: <defaults>
</compile_context>

<pallas_src>
import functools

import jax
import jax.numpy as jnp
from jax import lax
from jax.experimental import pallas as pl
from jax.experimental.pallas import tpu as pltpu


def _log_sigmoid(x):
    # numerically stable log(sigmoid(x)) = min(x, 0) - log(1 + exp(-|x|))
    return jnp.minimum(x, 0.0) - jnp.log1p(jnp.exp(-jnp.abs(x)))


def _round_up(x, m):
    return ((x + m - 1) // m) * m


def _cdiv(a, b):
    return -(-a // b)


def _cbow_loss_kernel(cen_p_ref, ctx_p_ref, cen_n_ref, ctx_n_ref,
                      u_t_ref, v_t_ref, out_ref, *, n_valid):
    """One batch tile of the CBOW negative-sampling loss.

    cen_*_ref : (1, TB) int32  center-word indices (batch on lanes)
    ctx_*_ref : (W, TB) int32  context-word indices
    u_t_ref   : (D, Vp) f32    u_embeddings^T (context table), vocab padded
    v_t_ref   : (D, Vp) f32    v_embeddings^T (center table),  vocab padded
    out_ref   : (1, TB) f32    per-column logsigmoid contribution
    """
    Vp = u_t_ref.shape[1]
    TB = cen_p_ref.shape[1]
    W = ctx_p_ref.shape[0]

    u_t = u_t_ref[...]                                    # (D, Vp)
    v_t = v_t_ref[...]                                    # (D, Vp)
    viota = lax.broadcasted_iota(jnp.int32, (Vp, TB), 0)  # vocab id per sublane

    def gather_t(table_t, idx_row):
        # one-hot gather on the MXU: (D, Vp) @ (Vp, TB) -> (D, TB)
        onehot = (viota == idx_row).astype(jnp.float32)
        return jnp.dot(table_t, onehot, preferred_element_type=jnp.float32)

    def ctx_sum_t(table_t, idx_mat):
        # count-matrix gather = gather + window-sum fused into one matmul.
        counts = jnp.zeros((Vp, TB), jnp.float32)
        for w in range(W):                                # W small & static
            counts = counts + (viota == idx_mat[w:w + 1, :]).astype(jnp.float32)
        return jnp.dot(table_t, counts, preferred_element_type=jnp.float32)

    cen_p = gather_t(v_t, cen_p_ref[...])                 # v_embeddings[pos_u]
    ctx_p = ctx_sum_t(u_t, ctx_p_ref[...])                # sum_w u_emb[pos_v]
    cen_n = gather_t(v_t, cen_n_ref[...])
    ctx_n = ctx_sum_t(u_t, ctx_n_ref[...])

    score_p = jnp.sum(cen_p * ctx_p, axis=0, keepdims=True)   # (1, TB)
    score_n = jnp.sum(cen_n * ctx_n, axis=0, keepdims=True)
    loss = _log_sigmoid(score_p) + _log_sigmoid(-score_n)

    # Pad mask from the global column index (no sign/mask stream from HBM).
    col = pl.program_id(0) * TB + lax.broadcasted_iota(jnp.int32, (1, TB), 1)
    out_ref[...] = jnp.where(col < n_valid, loss, 0.0)


def cbow_loss(u_emb, v_emb, pos_u, pos_v, neg_u, neg_v, block_n=4096):
    """Forward loss of CBOWModel.

    u_emb, v_emb : (2*emb_size-1, D) float32 embedding tables
    pos_u, neg_u : (B,)   int32  center-word indices
    pos_v, neg_v : (B, W) int32  context-word indices
    """
    B = pos_u.shape[0]
    W = pos_v.shape[1]
    vocab, D = u_emb.shape

    # TODO(synk): this in-kernel one-hot gather assumes a small/medium vocab
    # (table + (Vp, TB) one-hots in VMEM); a huge vocab would need the
    # streaming (XLA-gathered activations) variant instead.
    Vp = _round_up(vocab, 8)

    # Tile sizing: big enough to amortize the ~0.35us per-step overhead, but
    # (a) keep the (Vp, TB) intermediates well under VMEM limits and
    # (b) give the "parallel" grid axis >= 2 steps when possible (v7x 2 TCs).
    vmem_cap = max(128, ((6 * 1024 * 1024) // (16 * Vp)) // 128 * 128)
    tb = max(128, min(block_n, _round_up(_cdiv(B, 2), 128), vmem_cap))
    n_pad = _round_up(B, tb)
    pad = n_pad - B
    grid = (n_pad // tb,)

    # Tiny wrapper-side prep only: transposed/zero-padded tables and int32
    # index arrays (a few bytes per row; no f32 activation relayout passes).
    u_t = jnp.pad(u_emb.astype(jnp.float32).T, ((0, 0), (0, Vp - vocab)))
    v_t = jnp.pad(v_emb.astype(jnp.float32).T, ((0, 0), (0, Vp - vocab)))

    def prep_center(idx):                       # (B,)   -> (1, n_pad) int32
        return jnp.pad(idx.astype(jnp.int32), (0, pad)).reshape(1, n_pad)

    def prep_context(idx):                      # (B, W) -> (W, n_pad) int32
        return jnp.pad(idx.astype(jnp.int32).T, ((0, 0), (0, pad)))

    cen_p = prep_center(pos_u)
    ctx_p = prep_context(pos_v)
    cen_n = prep_center(neg_u)
    ctx_n = prep_context(neg_v)

    idx1_spec = pl.BlockSpec((1, tb), lambda i: (0, i))
    idxw_spec = pl.BlockSpec((W, tb), lambda i: (0, i))
    # Constant block index -> the tables are fetched once and stay resident.
    tab_spec = pl.BlockSpec((D, Vp), lambda i: (0, 0))

    cost = pl.CostEstimate(
        flops=int(n_pad * (8 * D * Vp + 2 * (1 + W) * Vp + 8 * D)),
        transcendentals=int(4 * n_pad),
        bytes_accessed=int(n_pad * ((1 + W) * 2 * 4 + 4) + 2 * D * Vp * 4),
    )

    partial_loss = pl.pallas_call(
        functools.partial(_cbow_loss_kernel, n_valid=B),
        out_shape=jax.ShapeDtypeStruct((1, n_pad), jnp.float32),
        grid=grid,
        in_specs=[idx1_spec, idxw_spec, idx1_spec, idxw_spec,
                  tab_spec, tab_spec],
        out_specs=pl.BlockSpec((1, tb), lambda i: (0, i)),
        compiler_params=pltpu.CompilerParams(
            dimension_semantics=("parallel",),
            vmem_limit_bytes=32 * 1024 * 1024),
        cost_estimate=cost,
    )(cen_p, ctx_p, cen_n, ctx_n, u_t, v_t)

    return -jnp.sum(partial_loss)


def _reference_loss(u_emb, v_emb, pos_u, pos_v, neg_u, neg_v):
    ctx_p = jnp.take(u_emb, pos_v, axis=0).sum(axis=1)
    ctx_n = jnp.take(u_emb, neg_v, axis=0).sum(axis=1)
    sp = jnp.sum(jnp.take(v_emb, pos_u, axis=0) * ctx_p, axis=1)
    sn = jnp.sum(jnp.take(v_emb, neg_u, axis=0) * ctx_n, axis=1)
    return -(jnp.sum(_log_sigmoid(sp)) + jnp.sum(_log_sigmoid(-sn)))


if __name__ == "__main__":
    # Small deterministic setup consistent with the module's __init__.
    emb_size = 16
    emb_dimension = 32
    window_size = 2
    vocab = 2 * emb_size - 1          # nn.Embedding(2*emb_size-1, D)
    B = 8                             # number of (center, context) pairs
    W = 2 * window_size               # context words per example
    # TODO(synk): the PyTorch forward allows variable-length context lists;
    # here a fixed window of W context words per example is assumed.

    key = jax.random.PRNGKey(0)
    k1, k2, k3, k4, k5, k6 = jax.random.split(key, 6)

    # init_emb(): u ~ U(-0.5/D, 0.5/D), v = 0 (deterministic, per module).
    initrange = 0.5 / emb_dimension
    u_emb = jax.random.uniform(
        k1, (vocab, emb_dimension), jnp.float32, -initrange, initrange)
    v_emb = jnp.zeros((vocab, emb_dimension), jnp.float32)

    pos_u = jax.random.randint(k2, (B,), 0, vocab, dtype=jnp.int32)
    pos_v = jax.random.randint(k3, (B, W), 0, vocab, dtype=jnp.int32)
    neg_u = jax.random.randint(k4, (B,), 0, vocab, dtype=jnp.int32)
    neg_v = jax.random.randint(k5, (B, W), 0, vocab, dtype=jnp.int32)

    # Check 1: module-consistent init (v_embeddings zero -> score 0 path).
    loss = jax.block_until_ready(
        cbow_loss(u_emb, v_emb, pos_u, pos_v, neg_u, neg_v))
    ref = jax.block_until_ready(
        _reference_loss(u_emb, v_emb, pos_u, pos_v, neg_u, neg_v))
    assert jnp.allclose(loss, ref, atol=1e-4, rtol=1e-4), (loss, ref)

    # Check 2: non-trivial v_embeddings to exercise the full math path.
    v_emb2 = jax.random.uniform(
        k6, (vocab, emb_dimension), jnp.float32, -initrange, initrange)
    loss2 = jax.block_until_ready(
        cbow_loss(u_emb, v_emb2, pos_u, pos_v, neg_u, neg_v))
    ref2 = jax.block_until_ready(
        _reference_loss(u_emb, v_emb2, pos_u, pos_v, neg_u, neg_v))
    assert jnp.allclose(loss2, ref2, atol=1e-4, rtol=1e-4), (loss2, ref2)

    print("KERNEL_OK")
</pallas_src>

<mosaic_0001>
module attributes {stable_mosaic.version = 11 : i64} {
  func.func @_cbow_loss_kernel(%arg0: i32, %arg1: memref<1x128xi32, #tpu.memory_space<vmem>>, %arg2: memref<4x128xi32, #tpu.memory_space<vmem>>, %arg3: memref<1x128xi32, #tpu.memory_space<vmem>>, %arg4: memref<4x128xi32, #tpu.memory_space<vmem>>, %arg5: memref<32x32xf32, #tpu.memory_space<vmem>>, %arg6: memref<32x32xf32, #tpu.memory_space<vmem>>, %arg7: memref<1x128xf32, #tpu.memory_space<vmem>>) attributes {dimension_semantics = [#tpu.dimension_semantics<parallel>], iteration_bounds = array<i64: 1>, scalar_prefetch = 0 : i64, scratch_operands = 0 : i64, tpu.core_type = #tpu.core_type<tc>, window_params = [{transform_indices = @transform_0, window_bounds = array<i64: 1, 128>}, {transform_indices = @transform_1, window_bounds = array<i64: 4, 128>}, {transform_indices = @transform_2, window_bounds = array<i64: 1, 128>}, {transform_indices = @transform_3, window_bounds = array<i64: 4, 128>}, {pipeline_mode = #tpu.pipeline_mode<synchronous>, transform_indices = @transform_4, window_bounds = array<i64: 32, 32>}, {pipeline_mode = #tpu.pipeline_mode<synchronous>, transform_indices = @transform_5, window_bounds = array<i64: 32, 32>}, {transform_indices = @transform_6, window_bounds = array<i64: 1, 128>}]} {
    %c0 = arith.constant 0 : index
    %c0_0 = arith.constant 0 : index
    %0 = vector.load %arg5[%c0, %c0_0] : memref<32x32xf32, #tpu.memory_space<vmem>>, vector<32x32xf32>
    %c0_1 = arith.constant 0 : index
    %c0_2 = arith.constant 0 : index
    %1 = vector.load %arg6[%c0_1, %c0_2] : memref<32x32xf32, #tpu.memory_space<vmem>>, vector<32x32xf32>
    %2 = tpu.iota {dimensions = array<i32: 0>} : vector<32x128xi32>
    %c0_3 = arith.constant 0 : index
    %c0_4 = arith.constant 0 : index
    %3 = vector.load %arg1[%c0_3, %c0_4] : memref<1x128xi32, #tpu.memory_space<vmem>>, vector<1x128xi32>
    %4 = vector.broadcast %3 : vector<1x128xi32> to vector<32x128xi32>
    %5 = arith.cmpi eq, %2, %4 : vector<32x128xi32>
    %6 = arith.extui %5 : vector<32x128xi1> to vector<32x128xi32>
    %7 = arith.sitofp %6 : vector<32x128xi32> to vector<32x128xf32>
    %cst = arith.constant dense<0.000000e+00> : vector<32x128xf32>
    %8 = tpu.matmul %1, %7, %cst {dimension_numbers = #tpu.dot_dimension_numbers<[1], [0], [0], [1], [0, 0, 1, 1], [], []>} : vector<32x32xf32>, vector<32x128xf32>, vector<32x128xf32> -> vector<32x128xf32>
    %c0_5 = arith.constant 0 : index
    %c0_6 = arith.constant 0 : index
    %9 = vector.load %arg2[%c0_5, %c0_6] : memref<4x128xi32, #tpu.memory_space<vmem>>, vector<4x128xi32>
    %cst_7 = arith.constant 0.000000e+00 : f32
    %10 = vector.broadcast %cst_7 : f32 to vector<32x128xf32>
    %11 = vector.extract_strided_slice %9 {offsets = [0, 0], sizes = [1, 128], strides = [1, 1]} : vector<4x128xi32> to vector<1x128xi32>
    %12 = vector.broadcast %11 : vector<1x128xi32> to vector<32x128xi32>
    %13 = arith.cmpi eq, %2, %12 : vector<32x128xi32>
    %14 = arith.extui %13 : vector<32x128xi1> to vector<32x128xi32>
    %15 = arith.sitofp %14 : vector<32x128xi32> to vector<32x128xf32>
    %16 = arith.addf %10, %15 : vector<32x128xf32>
    %17 = vector.extract_strided_slice %9 {offsets = [1, 0], sizes = [1, 128], strides = [1, 1]} : vector<4x128xi32> to vector<1x128xi32>
    %18 = vector.broadcast %17 : vector<1x128xi32> to vector<32x128xi32>
    %19 = arith.cmpi eq, %2, %18 : vector<32x128xi32>
    %20 = arith.extui %19 : vector<32x128xi1> to vector<32x128xi32>
    %21 = arith.sitofp %20 : vector<32x128xi32> to vector<32x128xf32>
    %22 = arith.addf %16, %21 : vector<32x128xf32>
    %23 = vector.extract_strided_slice %9 {offsets = [2, 0], sizes = [1, 128], strides = [1, 1]} : vector<4x128xi32> to vector<1x128xi32>
    %24 = vector.broadcast %23 : vector<1x128xi32> to vector<32x128xi32>
    %25 = arith.cmpi eq, %2, %24 : vector<32x128xi32>
    %26 = arith.extui %25 : vector<32x128xi1> to vector<32x128xi32>
    %27 = arith.sitofp %26 : vector<32x128xi32> to vector<32x128xf32>
    %28 = arith.addf %22, %27 : vector<32x128xf32>
    %29 = vector.extract_strided_slice %9 {offsets = [3, 0], sizes = [1, 128], strides = [1, 1]} : vector<4x128xi32> to vector<1x128xi32>
    %30 = vector.broadcast %29 : vector<1x128xi32> to vector<32x128xi32>
    %31 = arith.cmpi eq, %2, %30 : vector<32x128xi32>
    %32 = arith.extui %31 : vector<32x128xi1> to vector<32x128xi32>
    %33 = arith.sitofp %32 : vector<32x128xi32> to vector<32x128xf32>
    %34 = arith.addf %28, %33 : vector<32x128xf32>
    %cst_8 = arith.constant dense<0.000000e+00> : vector<32x128xf32>
    %35 = tpu.matmul %0, %34, %cst_8 {dimension_numbers = #tpu.dot_dimension_numbers<[1], [0], [0], [1], [0, 0, 1, 1], [], []>} : vector<32x32xf32>, vector<32x128xf32>, vector<32x128xf32> -> vector<32x128xf32>
    %c0_9 = arith.constant 0 : index
    %c0_10 = arith.constant 0 : index
    %36 = vector.load %arg3[%c0_9, %c0_10] : memref<1x128xi32, #tpu.memory_space<vmem>>, vector<1x128xi32>
    %37 = vector.broadcast %36 : vector<1x128xi32> to vector<32x128xi32>
    %38 = arith.cmpi eq, %2, %37 : vector<32x128xi32>
    %39 = arith.extui %38 : vector<32x128xi1> to vector<32x128xi32>
    %40 = arith.sitofp %39 : vector<32x128xi32> to vector<32x128xf32>
    %cst_11 = arith.constant dense<0.000000e+00> : vector<32x128xf32>
    %41 = tpu.matmul %1, %40, %cst_11 {dimension_numbers = #tpu.dot_dimension_numbers<[1], [0], [0], [1], [0, 0, 1, 1], [], []>} : vector<32x32xf32>, vector<32x128xf32>, vector<32x128xf32> -> vector<32x128xf32>
    %c0_12 = arith.constant 0 : index
    %c0_13 = arith.constant 0 : index
    %42 = vector.load %arg4[%c0_12, %c0_13] : memref<4x128xi32, #tpu.memory_space<vmem>>, vector<4x128xi32>
    %cst_14 = arith.constant 0.000000e+00 : f32
    %43 = vector.broadcast %cst_14 : f32 to vector<32x128xf32>
    %44 = vector.extract_strided_slice %42 {offsets = [0, 0], sizes = [1, 128], strides = [1, 1]} : vector<4x128xi32> to vector<1x128xi32>
    %45 = vector.broadcast %44 : vector<1x128xi32> to vector<32x128xi32>
    %46 = arith.cmpi eq, %2, %45 : vector<32x128xi32>
    %47 = arith.extui %46 : vector<32x128xi1> to vector<32x128xi32>
    %48 = arith.sitofp %47 : vector<32x128xi32> to vector<32x128xf32>
    %49 = arith.addf %43, %48 : vector<32x128xf32>
    %50 = vector.extract_strided_slice %42 {offsets = [1, 0], sizes = [1, 128], strides = [1, 1]} : vector<4x128xi32> to vector<1x128xi32>
    %51 = vector.broadcast %50 : vector<1x128xi32> to vector<32x128xi32>
    %52 = arith.cmpi eq, %2, %51 : vector<32x128xi32>
    %53 = arith.extui %52 : vector<32x128xi1> to vector<32x128xi32>
    %54 = arith.sitofp %53 : vector<32x128xi32> to vector<32x128xf32>
    %55 = arith.addf %49, %54 : vector<32x128xf32>
    %56 = vector.extract_strided_slice %42 {offsets = [2, 0], sizes = [1, 128], strides = [1, 1]} : vector<4x128xi32> to vector<1x128xi32>
    %57 = vector.broadcast %56 : vector<1x128xi32> to vector<32x128xi32>
    %58 = arith.cmpi eq, %2, %57 : vector<32x128xi32>
    %59 = arith.extui %58 : vector<32x128xi1> to vector<32x128xi32>
    %60 = arith.sitofp %59 : vector<32x128xi32> to vector<32x128xf32>
    %61 = arith.addf %55, %60 : vector<32x128xf32>
    %62 = vector.extract_strided_slice %42 {offsets = [3, 0], sizes = [1, 128], strides = [1, 1]} : vector<4x128xi32> to vector<1x128xi32>
    %63 = vector.broadcast %62 : vector<1x128xi32> to vector<32x128xi32>
    %64 = arith.cmpi eq, %2, %63 : vector<32x128xi32>
    %65 = arith.extui %64 : vector<32x128xi1> to vector<32x128xi32>
    %66 = arith.sitofp %65 : vector<32x128xi32> to vector<32x128xf32>
    %67 = arith.addf %61, %66 : vector<32x128xf32>
    %cst_15 = arith.constant dense<0.000000e+00> : vector<32x128xf32>
    %68 = tpu.matmul %0, %67, %cst_15 {dimension_numbers = #tpu.dot_dimension_numbers<[1], [0], [0], [1], [0, 0, 1, 1], [], []>} : vector<32x32xf32>, vector<32x128xf32>, vector<32x128xf32> -> vector<32x128xf32>
    %69 = arith.mulf %8, %35 : vector<32x128xf32>
    %cst_16 = arith.constant dense<0.000000e+00> : vector<128xf32>
    %70 = vector.multi_reduction <add>, %69, %cst_16 [0] : vector<32x128xf32> to vector<128xf32>
    %71 = vector.shape_cast %70 : vector<128xf32> to vector<1x128xf32>
    %72 = arith.mulf %41, %68 : vector<32x128xf32>
    %cst_17 = arith.constant dense<0.000000e+00> : vector<128xf32>
    %73 = vector.multi_reduction <add>, %72, %cst_17 [0] : vector<32x128xf32> to vector<128xf32>
    %74 = vector.shape_cast %73 : vector<128xf32> to vector<1x128xf32>
    %cst_18 = arith.constant 0.000000e+00 : f32
    %75 = vector.broadcast %cst_18 : f32 to vector<1x128xf32>
    %76 = arith.minimumf %71, %75 : vector<1x128xf32>
    %77 = math.absf %71 : vector<1x128xf32>
    %cst_19 = arith.constant 0.000000e+00 : f32
    %78 = vector.broadcast %cst_19 : f32 to vector<1x128xf32>
    %79 = arith.subf %78, %77 : vector<1x128xf32>
    %80 = math.exp %79 : vector<1x128xf32>
    %81 = math.log1p %80 : vector<1x128xf32>
    %82 = arith.subf %76, %81 : vector<1x128xf32>
    %cst_20 = arith.constant 0.000000e+00 : f32
    %83 = vector.broadcast %cst_20 : f32 to vector<1x128xf32>
    %84 = arith.subf %83, %74 : vector<1x128xf32>
    %cst_21 = arith.constant 0.000000e+00 : f32
    %85 = vector.broadcast %cst_21 : f32 to vector<1x128xf32>
    %86 = arith.minimumf %84, %85 : vector<1x128xf32>
    %87 = math.absf %84 : vector<1x128xf32>
    %cst_22 = arith.constant 0.000000e+00 : f32
    %88 = vector.broadcast %cst_22 : f32 to vector<1x128xf32>
    %89 = arith.subf %88, %87 : vector<1x128xf32>
    %90 = math.exp %89 : vector<1x128xf32>
    %91 = math.log1p %90 : vector<1x128xf32>
    %92 = arith.subf %86, %91 : vector<1x128xf32>
    %93 = arith.addf %82, %92 : vector<1x128xf32>
    %c128_i32 = arith.constant 128 : i32
    %94 = arith.muli %arg0, %c128_i32 : i32
    %95 = tpu.iota {dimensions = array<i32: 1>} : vector<1x128xi32>
    %96 = vector.broadcast %94 : i32 to vector<1x128xi32>
    %97 = arith.addi %96, %95 : vector<1x128xi32>
    %c8_i32 = arith.constant 8 : i32
    %98 = vector.broadcast %c8_i32 : i32 to vector<1x128xi32>
    %99 = arith.cmpi slt, %97, %98 : vector<1x128xi32>
    %cst_23 = arith.constant 0.000000e+00 : f32
    %100 = vector.broadcast %cst_23 : f32 to vector<1x128xf32>
    %101 = arith.select %99, %93, %100 : vector<1x128xi1>, vector<1x128xf32>
    %c0_24 = arith.constant 0 : index
    %c0_25 = arith.constant 0 : index
    %102 = vector.load %arg7[%c0_24, %c0_25] : memref<1x128xf32, #tpu.memory_space<vmem>>, vector<1x128xf32>
    tpu.vector_store %arg7[%c0_24, %c0_25], %101 {strides = array<i32>} : memref<1x128xf32, #tpu.memory_space<vmem>>, vector<1x128xf32>,
    return
  }
  func.func @transform_0(%arg0: i32) -> (i32, i32) {
    %c0_i32 = arith.constant 0 : i32
    %c0_i32_0 = arith.constant 0 : i32
    return %c0_i32, %arg0 : i32, i32
  }
  func.func @transform_1(%arg0: i32) -> (i32, i32) {
    %c0_i32 = arith.constant 0 : i32
    %c0_i32_0 = arith.constant 0 : i32
    return %c0_i32, %arg0 : i32, i32
  }
  func.func @transform_2(%arg0: i32) -> (i32, i32) {
    %c0_i32 = arith.constant 0 : i32
    %c0_i32_0 = arith.constant 0 : i32
    return %c0_i32, %arg0 : i32, i32
  }
  func.func @transform_3(%arg0: i32) -> (i32, i32) {
    %c0_i32 = arith.constant 0 : i32
    %c0_i32_0 = arith.constant 0 : i32
    return %c0_i32, %arg0 : i32, i32
  }
  func.func @transform_4(%arg0: i32) -> (i32, i32) {
    %c0_i32 = arith.constant 0 : i32
    %c0_i32_0 = arith.constant 0 : i32
    %c0_i32_1 = arith.constant 0 : i32
    return %c0_i32, %c0_i32_0 : i32, i32
  }
  func.func @transform_5(%arg0: i32) -> (i32, i32) {
    %c0_i32 = arith.constant 0 : i32
    %c0_i32_0 = arith.constant 0 : i32
    %c0_i32_1 = arith.constant 0 : i32
    return %c0_i32, %c0_i32_0 : i32, i32
  }
  func.func @transform_6(%arg0: i32) -> (i32, i32) {
    %c0_i32 = arith.constant 0 : i32
    %c0_i32_0 = arith.constant 0 : i32
    return %c0_i32, %arg0 : i32, i32
  }
}

</mosaic_0001>

<llo_original>
// kernel: tpu_custom_call.1
$region0: #{tpu_custom_call.1}
  #allocation0 [shape = 'u32[]', space=smem, size = 0x4, offset = 0x4, fixed_abs, tag = 'smem constant byte address 0x4 - core index']
  #allocation1 [shape = 'u32[72,128]{1,0:T(1,128)}', space=vmem, size = 0x9000, scoped, tag = 'internal scratch']
  %s0 = inlined_call_operand.hbm [shape: s32[1,128], index: 0, kind: input, shape index: {}]
  %s1 = inlined_call_operand.hbm [shape: s32[4,128], index: 1, kind: input, shape index: {}]
  %s2 = inlined_call_operand.vmem [shape: s32[1,128], index: 2, kind: input, shape index: {}]
  %s3 = inlined_call_operand.hbm [shape: s32[4,128], index: 3, kind: input, shape index: {}]
  %s4 = inlined_call_operand.hbm [shape: f32[32,32], index: 4, kind: input, shape index: {}]
  %s5 = inlined_call_operand.hbm [shape: f32[32,32], index: 5, kind: input, shape index: {}]
  %s6 = inlined_call_operand.hbm [shape: f32[1,128], index: 6, kind: output, shape index: {}]
  %s7 = sld [smem:[#allocation0]]
  $region54: #{tpu_custom_call.1} parent=0
    _
  %s9 = ssub.s32 1, %s7
  %s10 = scalar_select 0, %s9, %s7
  $region1: #{tpu_custom_call.1} parent=0
    #allocation2 [shape = 'u8[512]{0}', space=vmem, size = 0x400, scoped, tag = 'input window, operand 0, single buffered']
    #allocation3 [shape = 's32[1]{0}', space=sflag, size = 0x4, scoped, tag = 'scoped memory for tpu_custom_call.1']
    #allocation4 [shape = 's32[1]{0}', space=sflag, size = 0x4, scoped, tag = 'scoped memory for tpu_custom_call.1']
    #allocation5 [shape = 'u8[2048]{0}', space=vmem, size = 0x800, scoped, tag = 'input window, operand 1, single buffered']
    #allocation6 [shape = 's32[1]{0}', space=sflag, size = 0x4, scoped, tag = 'scoped memory for tpu_custom_call.1']
    #allocation7 [shape = 'u8[2048]{0}', space=vmem, size = 0x800, scoped, tag = 'input window, operand 3, single buffered']
    #allocation8 [shape = 'u8[16384]{0}', space=vmem, size = 0x4000, scoped, tag = 'input window, operand 4, single buffered']
    #allocation9 [shape = 's32[1]{0}', space=sflag, size = 0x4, scoped, tag = 'scoped memory for tpu_custom_call.1']
    #allocation10 [shape = 'u8[16384]{0}', space=vmem, size = 0x4000, scoped, tag = 'input window, operand 5, single buffered']
    #allocation11 [shape = 'u8[512]{0}', space=vmem, size = 0x400, scoped, tag = 'output window, operand 0, single buffered']
    %11 = vsyncpa [#allocation3], 0
    %12 = vsyncpa [#allocation6], 0
    %13 = vsyncpa [#allocation9], 0
    %14 = vsyncpa [#allocation4], 0
    // Predicated region
    $region2: #{tpu_custom_call.1} parent=1 // pred_check
      _
    $region3: #{tpu_custom_call.1} parent=1 // pred_check_branch
      %16 = sbr.rel (0) target = $region5
    $region4: #{tpu_custom_call.1} parent=1 // pred_region
      %18 = vsyncadd [#allocation3], 0
      %s20 = sshll.u32 %s0, 4
      %s21 = int_to_ptr.hbm [resolvable:$true] %s20
      %s22 = sshll.u32 [#allocation2], 4
      %s23 = int_to_ptr.vmem [resolvable:$true] %s22
      %25 = dma.hbm_to_vmem [thread:$0]  %s21, 16, %s23, [#allocation3]
    $region5: #{tpu_custom_call.1} parent=1 // pred_fallthru
      _
    // Predicated region
    $region6: #{tpu_custom_call.1} parent=1 // pred_check
      _
    $region7: #{tpu_custom_call.1} parent=1 // pred_check_branch
      %27 = sbr.rel (0) target = $region9
    $region8: #{tpu_custom_call.1} parent=1 // pred_region
      %29 = vsyncadd [#allocation6], 0
      %s31 = sshll.u32 %s1, 4
      %s32 = int_to_ptr.hbm [resolvable:$true] %s31
      %s33 = sshll.u32 [#allocation5], 4
      %s34 = int_to_ptr.vmem [resolvable:$true] %s33
      %36 = dma.hbm_to_vmem [thread:$0]  %s32, 64, %s34, [#allocation6]
    $region9: #{tpu_custom_call.1} parent=1 // pred_fallthru
      _
    // Predicated region
    $region10: #{tpu_custom_call.1} parent=1 // pred_check
      _
    $region11: #{tpu_custom_call.1} parent=1 // pred_check_branch
      %38 = sbr.rel (0) target = $region13
    $region12: #{tpu_custom_call.1} parent=1 // pred_region
      _
    $region13: #{tpu_custom_call.1} parent=1 // pred_fallthru
      _
    // Predicated region
    $region14: #{tpu_custom_call.1} parent=1 // pred_check
      _
    $region15: #{tpu_custom_call.1} parent=1 // pred_check_branch
      %40 = sbr.rel (0) target = $region17
    $region16: #{tpu_custom_call.1} parent=1 // pred_region
      %42 = vsyncadd [#allocation6], 0
      %s44 = sshll.u32 %s3, 4
      %s45 = int_to_ptr.hbm [resolvable:$true] %s44
      %s46 = sshll.u32 [#allocation7], 4
      %s47 = int_to_ptr.vmem [resolvable:$true] %s46
      %49 = dma.hbm_to_vmem [thread:$0]  %s45, 64, %s47, [#allocation6]
    $region17: #{tpu_custom_call.1} parent=1 // pred_fallthru
      _
    // Predicated region
    $region18: #{tpu_custom_call.1} parent=1 // pred_check
      _
    $region19: #{tpu_custom_call.1} parent=1 // pred_check_branch
      %51 = sbr.rel (0) target = $region21
    $region20: #{tpu_custom_call.1} parent=1 // pred_region
      %53 = vsyncadd [#allocation9], 0
      %s54 = sshll.u32 %s4, 4
      %s55 = int_to_ptr.hbm [resolvable:$true] %s54
      %s56 = sshll.u32 [#allocation8], 4
      %s57 = int_to_ptr.vmem [resolvable:$true] %s56
      %62 = dma.hbm_to_vmem [thread:$0]  %s55, 512, %s57, [#allocation9], 128, 128, 8
    $region21: #{tpu_custom_call.1} parent=1 // pred_fallthru
      _
    // Predicated region
    $region22: #{tpu_custom_call.1} parent=1 // pred_check
      _
    $region23: #{tpu_custom_call.1} parent=1 // pred_check_branch
      %64 = sbr.rel (0) target = $region25
    $region24: #{tpu_custom_call.1} parent=1 // pred_region
      %66 = vsyncadd [#allocation9], 0
      %s67 = sshll.u32 %s5, 4
      %s68 = int_to_ptr.hbm [resolvable:$true] %s67
      %s69 = sshll.u32 [#allocation10], 4
      %s70 = int_to_ptr.vmem [resolvable:$true] %s69
      %75 = dma.hbm_to_vmem [thread:$0]  %s68, 512, %s70, [#allocation9], 128, 128, 8
    $region25: #{tpu_custom_call.1} parent=1 // pred_fallthru
      _
    // Predicated region
    $region26: #{tpu_custom_call.1} parent=1 // pred_check
      _
    $region27: #{tpu_custom_call.1} parent=1 // pred_check_branch
      %77 = sbr.rel (0) target = $region29
    $region28: #{tpu_custom_call.1} parent=1 // pred_region
      %79 = dma.done [#allocation3], 16
    $region29: #{tpu_custom_call.1} parent=1 // pred_fallthru
      _
    // Predicated region
    $region30: #{tpu_custom_call.1} parent=1 // pred_check
      _
    $region31: #{tpu_custom_call.1} parent=1 // pred_check_branch
      %81 = sbr.rel (0) target = $region33
    $region32: #{tpu_custom_call.1} parent=1 // pred_region
      %83 = dma.done [#allocation6], 64
    $region33: #{tpu_custom_call.1} parent=1 // pred_fallthru
      _
    // Predicated region
    $region34: #{tpu_custom_call.1} parent=1 // pred_check
      _
    $region35: #{tpu_custom_call.1} parent=1 // pred_check_branch
      %85 = sbr.rel (0) target = $region37
    $region36: #{tpu_custom_call.1} parent=1 // pred_region
      %87 = dma.done [#allocation6], 64
    $region37: #{tpu_custom_call.1} parent=1 // pred_fallthru
      _
    // Predicated region
    $region38: #{tpu_custom_call.1} parent=1 // pred_check
      _
    $region39: #{tpu_custom_call.1} parent=1 // pred_check_branch
      %89 = sbr.rel (0) target = $region41
    $region40: #{tpu_custom_call.1} parent=1 // pred_region
      %91 = dma.done [#allocation9], 512
    $region41: #{tpu_custom_call.1} parent=1 // pred_fallthru
      _
    // Predicated region
    $region42: #{tpu_custom_call.1} parent=1 // pred_check
      _
    $region43: #{tpu_custom_call.1} parent=1 // pred_check_branch
      %93 = sbr.rel (0) target = $region45
    $region44: #{tpu_custom_call.1} parent=1 // pred_region
      %95 = dma.done [#allocation9], 512
    $region45: #{tpu_custom_call.1} parent=1 // pred_fallthru
      _
    %v96 = vld [vmem:[#allocation8] sm:$0xff]
    %v97 = vld [vmem:[#allocation8 + $0x8] sm:$0xff]
    %v98 = vld [vmem:[#allocation8 + $0x10] sm:$0xff]
    %v99 = vld [vmem:[#allocation8 + $0x18] sm:$0xff]
    %v100 = vld [vmem:[#allocation10] sm:$0xff]
    %v101 = vld [vmem:[#allocation10 + $0x8] sm:$0xff]
    %v102 = vld [vmem:[#allocation10 + $0x10] sm:$0xff]
    %v103 = vld [vmem:[#allocation10 + $0x18] sm:$0xff]
    %v104 = vlaneseq
    %v105 = vshrl.u32 %v104, 7
    %v106 = vadd.s32 %v105, 8
    %v107 = vadd.s32 %v105, 16
    %v108 = vadd.s32 %v105, 24
    %v109 = vld [vmem:[#allocation2] sm:$0x1]
    %v110 = vperm.slane %v109, 0
    %vm111 = vcmp.eq.s32.totalorder %v105, %v110
    %vm112 = vcmp.eq.s32.totalorder %v106, %v110
    %vm113 = vcmp.eq.s32.totalorder %v107, %v110
    %vm114 = vcmp.eq.s32.totalorder %v108, %v110
    %v115 = vsel %vm111, 1, 0
    %v116 = vsel %vm112, 1, 0
    %v117 = vsel %vm113, 1, 0
    %v118 = vsel %vm114, 1, 0
    %v119 = vcvt.s32.f32 %v115
    %v120 = vcvt.s32.f32 %v116
    %v121 = vcvt.s32.f32 %v117
    %v122 = vcvt.s32.f32 %v118
    %vm123 = vcmask 261120
    %v125 = vsel %vm123, %v100, 0
    %v128 = vsel %vm123, %v101, 0
    %v131 = vsel %vm123, %v102, 0
    %v134 = vsel %vm123, %v103, 0
    %136 = vmatpush.msra.mxu0 0.0
    %137 = vmatpush.msra.mxu0 0.0
    %138 = vmatpush.msra.mxu0 0.0
    %139 = vmatpush.msra.mxu0 0.0
    %140 = vmatpush.msra.mxu0 0.0
    %141 = vmatpush.msra.mxu0 0.0
    %142 = vmatpush.msra.mxu0 0.0
    %143 = vmatpush.msra.mxu0 0.0
    %144 = vmatpush.msra.mxu0 0.0
    %145 = vmatpush.msra.mxu0 0.0
    %146 = vmatpush.msra.mxu0 0.0
    %147 = vmatpush.msra.mxu0 0.0
    %148 = vmatpush.msra.mxu0 %v122
    %149 = vmatpush.msra.mxu0 %v121
    %150 = vmatpush.msra.mxu0 %v120
    %151 = vmatpush.msra.mxu0 %v119
    %152 = vmatmul.f32.gmra.mxu0 %v125
    %v153 = vpop.f32.mrf.mxu0
    %v154 = vadd.f32 0.0, %v153
    %155 = vmatmul.f32.gmra.mxu0 %v128
    %v156 = vpop.f32.mrf.mxu0
    %v157 = vadd.f32 0.0, %v156
    %158 = vmatmul.f32.gmra.mxu0 %v131
    %v159 = vpop.f32.mrf.mxu0
    %v160 = vadd.f32 0.0, %v159
    %161 = vmatmul.f32.gmra.mxu0 %v134
    %v162 = vpop.f32.mrf.mxu0
    %v163 = vadd.f32 0.0, %v162
    %164 = vdwg.mxu0
    %v165 = vld [vmem:[#allocation5] sm:$0xf]
    %v166 = vperm.slane %v165, 0
    %vm167 = vcmp.eq.s32.totalorder %v105, %v166
    %vm168 = vcmp.eq.s32.totalorder %v106, %v166
    %vm169 = vcmp.eq.s32.totalorder %v107, %v166
    %vm170 = vcmp.eq.s32.totalorder %v108, %v166
    %v171 = vsel %vm167, 1, 0
    %v172 = vsel %vm168, 1, 0
    %v173 = vsel %vm169, 1, 0
    %v174 = vsel %vm170, 1, 0
    %v175 = vcvt.s32.f32 %v171
    %v176 = vcvt.s32.f32 %v172
    %v177 = vcvt.s32.f32 %v173
    %v178 = vcvt.s32.f32 %v174
    %v179 = vadd.f32 %v175, 0.0
    %v180 = vadd.f32 %v176, 0.0
    %v181 = vadd.f32 %v177, 0.0
    %v182 = vadd.f32 %v178, 0.0
    %v183 = vperm.slane %v165, 1
    %vm184 = vcmp.eq.s32.totalorder %v105, %v183
    %vm185 = vcmp.eq.s32.totalorder %v106, %v183
    %vm186 = vcmp.eq.s32.totalorder %v107, %v183
    %vm187 = vcmp.eq.s32.totalorder %v108, %v183
    %v188 = vsel %vm184, 1, 0
    %v189 = vsel %vm185, 1, 0
    %v190 = vsel %vm186, 1, 0
    %v191 = vsel %vm187, 1, 0
    %v192 = vcvt.s32.f32 %v188
    %v193 = vcvt.s32.f32 %v189
    %v194 = vcvt.s32.f32 %v190
    %v195 = vcvt.s32.f32 %v191
    %v196 = vadd.f32 %v179, %v192
    %v197 = vadd.f32 %v180, %v193
    %v198 = vadd.f32 %v181, %v194
    %v199 = vadd.f32 %v182, %v195
    %v200 = vperm.slane %v165, 2
    %vm201 = vcmp.eq.s32.totalorder %v105, %v200
    %vm202 = vcmp.eq.s32.totalorder %v106, %v200
    %vm203 = vcmp.eq.s32.totalorder %v107, %v200
    %vm204 = vcmp.eq.s32.totalorder %v108, %v200
    %v205 = vsel %vm201, 1, 0
    %v206 = vsel %vm202, 1, 0
    %v207 = vsel %vm203, 1, 0
    %v208 = vsel %vm204, 1, 0
    %v209 = vcvt.s32.f32 %v205
    %v210 = vcvt.s32.f32 %v206
    %v211 = vcvt.s32.f32 %v207
    %v212 = vcvt.s32.f32 %v208
    %v213 = vadd.f32 %v196, %v209
    %v214 = vadd.f32 %v197, %v210
    %v215 = vadd.f32 %v198, %v211
    %v216 = vadd.f32 %v199, %v212
    %v217 = vperm.slane %v165, 3
    %vm218 = vcmp.eq.s32.totalorder %v105, %v217
    %vm219 = vcmp.eq.s32.totalorder %v106, %v217
    %vm220 = vcmp.eq.s32.totalorder %v107, %v217
    %vm221 = vcmp.eq.s32.totalorder %v108, %v217
    %v222 = vsel %vm218, 1, 0
    %v223 = vsel %vm219, 1, 0
    %v224 = vsel %vm220, 1, 0
    %v225 = vsel %vm221, 1, 0
    %v226 = vcvt.s32.f32 %v222
    %v227 = vcvt.s32.f32 %v223
    %v228 = vcvt.s32.f32 %v224
    %v229 = vcvt.s32.f32 %v225
    %v230 = vadd.f32 %v213, %v226
    %v231 = vadd.f32 %v214, %v227
    %v232 = vadd.f32 %v215, %v228
    %v233 = vadd.f32 %v216, %v229
    %v235 = vsel %vm123, %v96, 0
    %v238 = vsel %vm123, %v97, 0
    %v241 = vsel %vm123, %v98, 0
    %v244 = vsel %vm123, %v99, 0
    %246 = vmatpush.msra.mxu0 0.0
    %247 = vmatpush.msra.mxu0 0.0
    %248 = vmatpush.msra.mxu0 0.0
    %249 = vmatpush.msra.mxu0 0.0
    %250 = vmatpush.msra.mxu0 0.0
    %251 = vmatpush.msra.mxu0 0.0
    %252 = vmatpush.msra.mxu0 0.0
    %253 = vmatpush.msra.mxu0 0.0
    %254 = vmatpush.msra.mxu0 0.0
    %255 = vmatpush.msra.mxu0 0.0
    %256 = vmatpush.msra.mxu0 0.0
    %257 = vmatpush.msra.mxu0 0.0
    %258 = vmatpush.msra.mxu0 %v233
    %259 = vmatpush.msra.mxu0 %v232
    %260 = vmatpush.msra.mxu0 %v231
    %261 = vmatpush.msra.mxu0 %v230
    %262 = vmatmul.f32.gmra.mxu0 %v235
    %v263 = vpop.f32.mrf.mxu0
    %v264 = vadd.f32 0.0, %v263
    %265 = vmatmul.f32.gmra.mxu0 %v238
    %v266 = vpop.f32.mrf.mxu0
    %v267 = vadd.f32 0.0, %v266
    %268 = vmatmul.f32.gmra.mxu0 %v241
    %v269 = vpop.f32.mrf.mxu0
    %v270 = vadd.f32 0.0, %v269
    %271 = vmatmul.f32.gmra.mxu0 %v244
    %v272 = vpop.f32.mrf.mxu0
    %v273 = vadd.f32 0.0, %v272
    %274 = vdwg.mxu0
    %v275 = vld [vmem:[%s2] sm:$0x1]
    %v276 = vperm.slane %v275, 0
    %vm277 = vcmp.eq.s32.totalorder %v105, %v276
    %vm278 = vcmp.eq.s32.totalorder %v106, %v276
    %vm279 = vcmp.eq.s32.totalorder %v107, %v276
    %vm280 = vcmp.eq.s32.totalorder %v108, %v276
    %v281 = vsel %vm277, 1, 0
    %v282 = vsel %vm278, 1, 0
    %v283 = vsel %vm279, 1, 0
    %v284 = vsel %vm280, 1, 0
    %v285 = vcvt.s32.f32 %v281
    %v286 = vcvt.s32.f32 %v282
    %v287 = vcvt.s32.f32 %v283
    %v288 = vcvt.s32.f32 %v284
    %289 = vmatpush.msra.mxu0 0.0
    %290 = vmatpush.msra.mxu0 0.0
    %291 = vmatpush.msra.mxu0 0.0
    %292 = vmatpush.msra.mxu0 0.0
    %293 = vmatpush.msra.mxu0 0.0
    %294 = vmatpush.msra.mxu0 0.0
    %295 = vmatpush.msra.mxu0 0.0
    %296 = vmatpush.msra.mxu0 0.0
    %297 = vmatpush.msra.mxu0 0.0
    %298 = vmatpush.msra.mxu0 0.0
    %299 = vmatpush.msra.mxu0 0.0
    %300 = vmatpush.msra.mxu0 0.0
    %301 = vmatpush.msra.mxu0 %v288
    %302 = vmatpush.msra.mxu0 %v287
    %303 = vmatpush.msra.mxu0 %v286
    %304 = vmatpush.msra.mxu0 %v285
    %305 = vmatmul.f32.gmra.mxu0 %v125
    %v306 = vpop.f32.mrf.mxu0
    %v307 = vadd.f32 0.0, %v306
    %308 = vmatmul.f32.gmra.mxu0 %v128
    %v309 = vpop.f32.mrf.mxu0
    %v310 = vadd.f32 0.0, %v309
    %311 = vmatmul.f32.gmra.mxu0 %v131
    %v312 = vpop.f32.mrf.mxu0
    %v313 = vadd.f32 0.0, %v312
    %314 = vmatmul.f32.gmra.mxu0 %v134
    %v315 = vpop.f32.mrf.mxu0
    %v316 = vadd.f32 0.0, %v315
    %317 = vdwg.mxu0
    %v318 = vld [vmem:[#allocation7] sm:$0xf]
    %v319 = vperm.slane %v318, 0
    %vm320 = vcmp.eq.s32.totalorder %v105, %v319
    %vm321 = vcmp.eq.s32.totalorder %v106, %v319
    %vm322 = vcmp.eq.s32.totalorder %v107, %v319
    %vm323 = vcmp.eq.s32.totalorder %v108, %v319
    %v324 = vsel %vm320, 1, 0
    %v325 = vsel %vm321, 1, 0
    %v326 = vsel %vm322, 1, 0
    %v327 = vsel %vm323, 1, 0
    %v328 = vcvt.s32.f32 %v324
    %v329 = vcvt.s32.f32 %v325
    %v330 = vcvt.s32.f32 %v326
    %v331 = vcvt.s32.f32 %v327
    %v332 = vadd.f32 %v328, 0.0
    %v333 = vadd.f32 %v329, 0.0
    %v334 = vadd.f32 %v330, 0.0
    %v335 = vadd.f32 %v331, 0.0
    %v336 = vperm.slane %v318, 1
    %vm337 = vcmp.eq.s32.totalorder %v105, %v336
    %vm338 = vcmp.eq.s32.totalorder %v106, %v336
    %vm339 = vcmp.eq.s32.totalorder %v107, %v336
    %vm340 = vcmp.eq.s32.totalorder %v108, %v336
    %v341 = vsel %vm337, 1, 0
    %v342 = vsel %vm338, 1, 0
    %v343 = vsel %vm339, 1, 0
    %v344 = vsel %vm340, 1, 0
    %v345 = vcvt.s32.f32 %v341
    %v346 = vcvt.s32.f32 %v342
    %v347 = vcvt.s32.f32 %v343
    %v348 = vcvt.s32.f32 %v344
    %v349 = vadd.f32 %v332, %v345
    %v350 = vadd.f32 %v333, %v346
    %v351 = vadd.f32 %v334, %v347
    %v352 = vadd.f32 %v335, %v348
    %v353 = vperm.slane %v318, 2
    %vm354 = vcmp.eq.s32.totalorder %v105, %v353
    %vm355 = vcmp.eq.s32.totalorder %v106, %v353
    %vm356 = vcmp.eq.s32.totalorder %v107, %v353
    %vm357 = vcmp.eq.s32.totalorder %v108, %v353
    %v358 = vsel %vm354, 1, 0
    %v359 = vsel %vm355, 1, 0
    %v360 = vsel %vm356, 1, 0
    %v361 = vsel %vm357, 1, 0
    %v362 = vcvt.s32.f32 %v358
    %v363 = vcvt.s32.f32 %v359
    %v364 = vcvt.s32.f32 %v360
    %v365 = vcvt.s32.f32 %v361
    %v366 = vadd.f32 %v349, %v362
    %v367 = vadd.f32 %v350, %v363
    %v368 = vadd.f32 %v351, %v364
    %v369 = vadd.f32 %v352, %v365
    %v370 = vperm.slane %v318, 3
    %vm371 = vcmp.eq.s32.totalorder %v105, %v370
    %vm372 = vcmp.eq.s32.totalorder %v106, %v370
    %vm373 = vcmp.eq.s32.totalorder %v107, %v370
    %vm374 = vcmp.eq.s32.totalorder %v108, %v370
    %v375 = vsel %vm371, 1, 0
    %v376 = vsel %vm372, 1, 0
    %v377 = vsel %vm373, 1, 0
    %v378 = vsel %vm374, 1, 0
    %v379 = vcvt.s32.f32 %v375
    %v380 = vcvt.s32.f32 %v376
    %v381 = vcvt.s32.f32 %v377
    %v382 = vcvt.s32.f32 %v378
    %v383 = vadd.f32 %v366, %v379
    %v384 = vadd.f32 %v367, %v380
    %v385 = vadd.f32 %v368, %v381
    %v386 = vadd.f32 %v369, %v382
    %387 = vmatpush.msra.mxu0 0.0
    %388 = vmatpush.msra.mxu0 0.0
    %389 = vmatpush.msra.mxu0 0.0
    %390 = vmatpush.msra.mxu0 0.0
    %391 = vmatpush.msra.mxu0 0.0
    %392 = vmatpush.msra.mxu0 0.0
    %393 = vmatpush.msra.mxu0 0.0
    %394 = vmatpush.msra.mxu0 0.0
    %395 = vmatpush.msra.mxu0 0.0
    %396 = vmatpush.msra.mxu0 0.0
    %397 = vmatpush.msra.mxu0 0.0
    %398 = vmatpush.msra.mxu0 0.0
    %399 = vmatpush.msra.mxu0 %v386
    %400 = vmatpush.msra.mxu0 %v385
    %401 = vmatpush.msra.mxu0 %v384
    %402 = vmatpush.msra.mxu0 %v383
    %403 = vmatmul.f32.gmra.mxu0 %v235
    %v404 = vpop.f32.mrf.mxu0
    %v405 = vadd.f32 0.0, %v404
    %406 = vmatmul.f32.gmra.mxu0 %v238
    %v407 = vpop.f32.mrf.mxu0
    %v408 = vadd.f32 0.0, %v407
    %409 = vmatmul.f32.gmra.mxu0 %v241
    %v410 = vpop.f32.mrf.mxu0
    %v411 = vadd.f32 0.0, %v410
    %412 = vmatmul.f32.gmra.mxu0 %v244
    %v413 = vpop.f32.mrf.mxu0
    %v414 = vadd.f32 0.0, %v413
    %415 = vdwg.mxu0
    %v416 = vmul.f32 %v154, %v264
    %v417 = vmul.f32 %v157, %v267
    %v418 = vmul.f32 %v160, %v270
    %v419 = vmul.f32 %v163, %v273
    %v420 = vadd.f32 %v416, %v417
    %v421 = vadd.f32 %v420, %v418
    %v422 = vadd.f32 %v421, %v419
    %v423 = vrot.slane %v422, 4
    %v424 = vadd.f32 %v422, %v423
    %v425 = vrot.slane %v424, 2
    %v426 = vadd.f32 %v424, %v425
    %v427 = vrot.slane %v426, 1
    %v428 = vadd.f32 %v426, %v427
    %v429 = vmul.f32 %v307, %v405
    %v430 = vmul.f32 %v310, %v408
    %v431 = vmul.f32 %v313, %v411
    %v432 = vmul.f32 %v316, %v414
    %v433 = vadd.f32 %v429, %v430
    %v434 = vadd.f32 %v433, %v431
    %v435 = vadd.f32 %v434, %v432
    %v436 = vrot.slane %v435, 4
    %v437 = vadd.f32 %v435, %v436
    %v438 = vrot.slane %v437, 2
    %v439 = vadd.f32 %v437, %v438
    %v440 = vrot.slane %v439, 1
    %v441 = vadd.f32 %v439, %v440
    %v442 = vmin.f32 %v428, 0.0
    %v443 = vand.u32 2147483647, %v428
    %v444 = vsub.f32 0.0, %v443
    %v445 = vmul.f32 %v444, 1.442695
    %v446 = vpow.pop %v445
    %v447 = vadd.f32 %v446, 1.0
    %v448 = vlog2.pop %v447
    %v449 = vmul.f32 %v448, 0.6931472
    %v450 = vmul.f32 -0.5, %v446
    %v451 = vadd.f32 %v450, 1.0
    %v452 = vmul.f32 %v451, %v446
    %v453 = vand.u32 2147483647, %v446
    %vm454 = vcmp.lt.f32.partialorder %v453, 0.0004427343
    %v455 = vsel %vm454, %v452, %v449
    %v456 = vsub.f32 %v442, %v455
    %v457 = vsub.f32 0.0, %v441
    %v458 = vmin.f32 %v457, 0.0
    %v459 = vand.u32 2147483647, %v457
    %v460 = vsub.f32 0.0, %v459
    %v461 = vmul.f32 %v460, 1.442695
    %v462 = vpow.pop %v461
    %v463 = vadd.f32 %v462, 1.0
    %v464 = vlog2.pop %v463
    %v465 = vmul.f32 %v464, 0.6931472
    %v466 = vmul.f32 -0.5, %v462
    %v467 = vadd.f32 %v466, 1.0
    %v468 = vmul.f32 %v467, %v462
    %v469 = vand.u32 2147483647, %v462
    %vm470 = vcmp.lt.f32.partialorder %v469, 0.0004427343
    %v471 = vsel %vm470, %v468, %v465
    %v472 = vsub.f32 %v458, %v471
    %v473 = vadd.f32 %v456, %v472
    %s474 = smul.u32 0, 128
    %v475 = vlaneseq
    %v476 = vand.u32 %v475, 127
    %v477 = vstv %s474
    %v478 = vadd.s32 %v477, %v476
    %vm479 = vcmp.lt.s32.totalorder %v478, 8
    %v480 = vsel %vm479, %v473, 0.0
    %481 = vst [vmem:[#allocation11] sm:$0x1] %v480
    // Predicated region
    $region46: #{tpu_custom_call.1} parent=1 // pred_check
      _
    $region47: #{tpu_custom_call.1} parent=1 // pred_check_branch
      %483 = sbr.rel (0) target = $region49
    $region48: #{tpu_custom_call.1} parent=1 // pred_region
      %485 = vsyncadd [#allocation4], 0
      %s487 = sshll.u32 [#allocation11], 4
      %s488 = int_to_ptr.vmem [resolvable:$true] %s487
      %s489 = sshll.u32 %s6, 4
      %s490 = int_to_ptr.hbm [resolvable:$true] %s489
      %492 = dma.vmem_to_hbm [thread:$0]  %s488, 16, %s490, [#allocation4]
    $region49: #{tpu_custom_call.1} parent=1 // pred_fallthru
      _
    // Predicated region
    $region50: #{tpu_custom_call.1} parent=1 // pred_check
      _
    $region51: #{tpu_custom_call.1} parent=1 // pred_check_branch
      %494 = sbr.rel (0) target = $region53
    $region52: #{tpu_custom_call.1} parent=1 // pred_region
      %496 = dma.done [#allocation4], 16
    $region53: #{tpu_custom_call.1} parent=1 // pred_fallthru
      _
    %497 = vsyncpa [#allocation3], 1
    %498 = vsyncpa [#allocation6], 1
    %499 = vsyncpa [#allocation9], 1
    %500 = vsyncpa [#allocation4], 1

</llo_original>
